<compile_context>
chip_gen: v5e
topology: v5e:2x2
jax: 0.10.0
libtpu: 0.0.40
codegen_flags: <defaults>
</compile_context>

<pallas_src>
import functools

import jax
import jax.numpy as jnp
import numpy as np
from jax.experimental import pallas as pl
from jax.experimental.pallas import tpu as pltpu


# ---------------------------------------------------------------------------
# small helpers
# ---------------------------------------------------------------------------
def _round_up(x, m):
    return ((x + m - 1) // m) * m


def _pick_tile(dim, max_tile, align):
    """Largest tile (multiple of `align`, <= max_tile) dividing round_up(dim, align)."""
    d = _round_up(dim, align)
    best = align
    t = align
    while t <= min(max_tile, d):
        if d % t == 0:
            best = t
        t += align
    return best, d


def _pad2d(x, rows, cols, value=0):
    pr, pc = rows - x.shape[0], cols - x.shape[1]
    if pr == 0 and pc == 0:
        return x
    return jnp.pad(x, ((0, pr), (0, pc)), constant_values=value)


# ---------------------------------------------------------------------------
# Pallas kernels
# ---------------------------------------------------------------------------
def _matmul_bias_act_kernel(x_ref, w_ref, b_ref, o_ref, acc_ref, *, act):
    k = pl.program_id(2)

    @pl.when(k == 0)
    def _():
        acc_ref[...] = jnp.zeros_like(acc_ref)

    acc_ref[...] += jnp.dot(
        x_ref[...], w_ref[...], preferred_element_type=jnp.float32
    )

    @pl.when(k == pl.num_programs(2) - 1)
    def _():
        r = acc_ref[...] + b_ref[...].astype(jnp.float32)
        if act == "gelu":
            # exact (erf-based) GELU, matching hidden_act='gelu'
            r = 0.5 * r * (1.0 + jax.lax.erf(r * 0.7071067811865476))
        o_ref[...] = r.astype(o_ref.dtype)


def _layernorm_kernel(x_ref, g_ref, b_ref, o_ref, *, eps):
    x = x_ref[...].astype(jnp.float32)
    mean = jnp.mean(x, axis=-1, keepdims=True)
    var = jnp.mean((x - mean) ** 2, axis=-1, keepdims=True)
    y = (x - mean) * jax.lax.rsqrt(var + eps)
    o_ref[...] = (y * g_ref[...] + b_ref[...]).astype(o_ref.dtype)


def _add_layernorm_kernel(x_ref, r_ref, g_ref, b_ref, o_ref, *, eps):
    # residual add fused into the normalization kernel
    x = x_ref[...].astype(jnp.float32) + r_ref[...].astype(jnp.float32)
    mean = jnp.mean(x, axis=-1, keepdims=True)
    var = jnp.mean((x - mean) ** 2, axis=-1, keepdims=True)
    y = (x - mean) * jax.lax.rsqrt(var + eps)
    o_ref[...] = (y * g_ref[...] + b_ref[...]).astype(o_ref.dtype)


def _emb_add_ln_kernel(x_ref, pt_ref, g_ref, b_ref, o_ref, *, eps):
    # word-embedding rows + (position + token_type) rows fused with LayerNorm
    x = x_ref[0].astype(jnp.float32) + pt_ref[...].astype(jnp.float32)
    mean = jnp.mean(x, axis=-1, keepdims=True)
    var = jnp.mean((x - mean) ** 2, axis=-1, keepdims=True)
    y = (x - mean) * jax.lax.rsqrt(var + eps)
    o_ref[0] = (y * g_ref[...] + b_ref[...]).astype(o_ref.dtype)


def _attention_kernel(q_ref, k_ref, v_ref, o_ref, *, nh, dh, scale):
    # q_ref: (1, tq, H) query tile; k_ref/v_ref: (1, S, H) full key/value rows.
    # Heads are processed sequentially; each head's context is cast to bf16 and stored
    # into its output slice immediately (short f32 live ranges, no big concat).
    for h in range(nh):
        q = q_ref[0, :, h * dh:(h + 1) * dh]
        k = k_ref[0, :, h * dh:(h + 1) * dh]
        v = v_ref[0, :, h * dh:(h + 1) * dh]
        s = jax.lax.dot_general(
            q, k, (((1,), (1,)), ((), ())), preferred_element_type=jnp.float32
        )
        s = s * scale                                   # scale applied in f32
        m = jnp.max(s, axis=-1, keepdims=True)
        p = jnp.exp(s - m)
        p = p * pl.reciprocal(jnp.sum(p, axis=-1, keepdims=True), approx=True)
        ctx = jnp.dot(p.astype(v.dtype), v, preferred_element_type=jnp.float32)
        o_ref[0, :, h * dh:(h + 1) * dh] = ctx.astype(o_ref.dtype)


def _decoder_ce_kernel(x_ref, w_ref, b_ref, lab_ref,
                       logits_ref, loss_ref, cnt_ref,
                       m_ref, s_ref, t_ref, *, valid_v):
    # logits = x @ wt + bias (tied decoder weight pre-transposed to [H, Vp]);
    # cross-entropy with ignore_index=-100 accumulated online over vocab tiles (j axis).
    # Full hidden contraction per step -> no k axis, no accumulator carry, and the
    # activation tile (index (i, 0)) is not re-fetched across vocab tiles.
    j = pl.program_id(1)
    nj = pl.num_programs(1)
    tv = logits_ref.shape[1]

    logits = jnp.dot(x_ref[...], w_ref[...], preferred_element_type=jnp.float32)
    logits = logits + b_ref[...].astype(jnp.float32)
    col = j * tv + jax.lax.broadcasted_iota(jnp.int32, logits.shape, 1)
    # mask vocab-padding columns so they never affect the softmax
    logits = jnp.where(col < valid_v, logits, -1e30)
    logits_ref[...] = logits.astype(logits_ref.dtype)   # bf16 writeback

    labels = lab_ref[...]                                # (tm, 1) int32

    @pl.when(j == 0)
    def _():
        m_ref[...] = jnp.full_like(m_ref, -1e30)
        s_ref[...] = jnp.zeros_like(s_ref)
        t_ref[...] = jnp.zeros_like(t_ref)

    m_old = m_ref[...]
    m_new = jnp.maximum(m_old, jnp.max(logits, axis=-1, keepdims=True))
    alpha = jnp.exp(m_old - m_new)
    s_ref[...] = s_ref[...] * alpha + jnp.sum(
        jnp.exp(logits - m_new), axis=-1, keepdims=True)
    m_ref[...] = m_new
    onehot = (col == labels).astype(jnp.float32)
    t_ref[...] += jnp.sum(onehot * logits, axis=-1, keepdims=True)

    @pl.when(j == nj - 1)
    def _():
        valid = (labels != -100).astype(jnp.float32)     # ignore_index=-100
        lse = jnp.log(s_ref[...]) + m_ref[...]
        loss_ref[...] = (lse - t_ref[...]) * valid
        cnt_ref[...] = valid


# ---------------------------------------------------------------------------
# Wrappers around pallas_call
# ---------------------------------------------------------------------------
def matmul_bias_act(x, w, b, act=None):
    M, K = x.shape
    K2, N = w.shape
    assert K == K2
    max_tm = 1024 if M >= 4096 else 512
    tm, Mp = _pick_tile(M, max_tm, 8)
    tn, Np = _pick_tile(N, 768, 128)
    tk, Kp = _pick_tile(K, 768, 128)
    # For standard BERT dims (768/3072) these pads are no-ops (tiles divide the dims).
    xp = _pad2d(x, Mp, Kp)
    wp = _pad2d(w, Kp, Np)
    bp = _pad2d(b.reshape(1, N).astype(jnp.float32), 1, Np)

    kernel = functools.partial(_matmul_bias_act_kernel, act=act)
    out = pl.pallas_call(
        kernel,
        out_shape=jax.ShapeDtypeStruct((Mp, Np), x.dtype),
        grid_spec=pltpu.PrefetchScalarGridSpec(
            num_scalar_prefetch=0,
            grid=(Mp // tm, Np // tn, Kp // tk),
            in_specs=[
                pl.BlockSpec((tm, tk), lambda i, j, k: (i, k)),
                pl.BlockSpec((tk, tn), lambda i, j, k: (k, j)),
                pl.BlockSpec((1, tn), lambda i, j, k: (0, j)),
            ],
            out_specs=pl.BlockSpec((tm, tn), lambda i, j, k: (i, j)),
            scratch_shapes=[pltpu.VMEM((tm, tn), jnp.float32)],
        ),
        compiler_params=pltpu.CompilerParams(
            dimension_semantics=("parallel", "parallel", "arbitrary")
        ),
    )(xp, wp, bp)
    if (Mp, Np) != (M, N):
        out = out[:M, :N]
    return out


def layernorm(x, gamma, beta, residual=None, eps=1e-12):
    M, H = x.shape
    tm, Mp = _pick_tile(M, 512, 8)
    xp = _pad2d(x, Mp, H)
    g = gamma.reshape(1, H).astype(jnp.float32)
    b = beta.reshape(1, H).astype(jnp.float32)
    row_spec = pl.BlockSpec((tm, H), lambda i: (i, 0))
    vec_spec = pl.BlockSpec((1, H), lambda i: (0, 0))

    if residual is None:
        kernel = functools.partial(_layernorm_kernel, eps=eps)
        args = (xp, g, b)
        in_specs = [row_spec, vec_spec, vec_spec]
    else:
        rp = _pad2d(residual, Mp, H)
        kernel = functools.partial(_add_layernorm_kernel, eps=eps)
        args = (xp, rp, g, b)
        in_specs = [row_spec, row_spec, vec_spec, vec_spec]

    out = pl.pallas_call(
        kernel,
        out_shape=jax.ShapeDtypeStruct((Mp, H), x.dtype),
        grid_spec=pltpu.PrefetchScalarGridSpec(
            num_scalar_prefetch=0,
            grid=(Mp // tm,),
            in_specs=in_specs,
            out_specs=row_spec,
        ),
        compiler_params=pltpu.CompilerParams(dimension_semantics=("parallel",)),
    )(*args)
    return out[:M] if Mp != M else out


def embedding_layernorm(x, pos_type, gamma, beta, eps=1e-12):
    """x: [B, S, H] gathered word embeddings; pos_type: [S, H] (pos + token_type rows)."""
    B, S, H = x.shape
    g = gamma.reshape(1, H).astype(jnp.float32)
    b = beta.reshape(1, H).astype(jnp.float32)
    return pl.pallas_call(
        functools.partial(_emb_add_ln_kernel, eps=eps),
        out_shape=jax.ShapeDtypeStruct((B, S, H), x.dtype),
        grid_spec=pltpu.PrefetchScalarGridSpec(
            num_scalar_prefetch=0,
            grid=(B,),
            in_specs=[
                pl.BlockSpec((1, S, H), lambda i: (i, 0, 0)),
                pl.BlockSpec((S, H), lambda i: (0, 0)),
                pl.BlockSpec((1, H), lambda i: (0, 0)),
                pl.BlockSpec((1, H), lambda i: (0, 0)),
            ],
            out_specs=pl.BlockSpec((1, S, H), lambda i: (i, 0, 0)),
        ),
        compiler_params=pltpu.CompilerParams(dimension_semantics=("parallel",)),
    )(x, pos_type, g, b)


def attention(qkv, nh, dh):
    """qkv: [B, S, 3H] fused projection. Grid (B, S//tq), both parallel."""
    B, S, threeH = qkv.shape
    H = nh * dh
    if S % 8 == 0:
        tq, _ = _pick_tile(S, 256, 8)
    else:
        tq = S
    kernel = functools.partial(
        _attention_kernel, nh=nh, dh=dh, scale=1.0 / float(np.sqrt(dh)))
    return pl.pallas_call(
        kernel,
        out_shape=jax.ShapeDtypeStruct((B, S, H), qkv.dtype),
        grid_spec=pltpu.PrefetchScalarGridSpec(
            num_scalar_prefetch=0,
            grid=(B, S // tq),
            in_specs=[
                # three lane-dense views of the same fused qkv tensor: q tile, full K, full V
                pl.BlockSpec((1, tq, H), lambda b, qi: (b, qi, 0)),
                pl.BlockSpec((1, S, H), lambda b, qi: (b, 0, 1)),
                pl.BlockSpec((1, S, H), lambda b, qi: (b, 0, 2)),
            ],
            out_specs=pl.BlockSpec((1, tq, H), lambda b, qi: (b, qi, 0)),
        ),
        compiler_params=pltpu.CompilerParams(
            dimension_semantics=("parallel", "parallel")),
    )(qkv, qkv, qkv)


def decoder_cross_entropy(t, wt, bias, labels, valid_v):
    """Tied decoder (logits = t @ wt + bias, wt pre-transposed/padded [Hp, Vp]) fused with CE."""
    M, H = t.shape
    Hp, Vp = wt.shape
    tm, Mp = _pick_tile(M, 512, 8)
    tv, _ = _pick_tile(Vp, 1024, 128)

    tp = _pad2d(t, Mp, Hp)
    bp = bias.reshape(1, Vp).astype(jnp.float32)
    lab = labels.reshape(M, 1).astype(jnp.int32)
    labp = _pad2d(lab, Mp, 1, value=-100)

    kernel = functools.partial(_decoder_ce_kernel, valid_v=valid_v)
    logits, loss, cnt = pl.pallas_call(
        kernel,
        out_shape=(
            jax.ShapeDtypeStruct((Mp, Vp), jnp.bfloat16),   # bf16 logits: half the HBM write
            jax.ShapeDtypeStruct((Mp, 1), jnp.float32),
            jax.ShapeDtypeStruct((Mp, 1), jnp.float32),
        ),
        grid_spec=pltpu.PrefetchScalarGridSpec(
            num_scalar_prefetch=0,
            grid=(Mp // tm, Vp // tv),
            in_specs=[
                pl.BlockSpec((tm, Hp), lambda i, j: (i, 0)),   # constant across j: no re-DMA
                pl.BlockSpec((Hp, tv), lambda i, j: (0, j)),   # standard [K, N] weight stream
                pl.BlockSpec((1, tv), lambda i, j: (0, j)),
                pl.BlockSpec((tm, 1), lambda i, j: (i, 0)),
            ],
            out_specs=(
                pl.BlockSpec((tm, tv), lambda i, j: (i, j)),
                pl.BlockSpec((tm, 1), lambda i, j: (i, 0)),
                pl.BlockSpec((tm, 1), lambda i, j: (i, 0)),
            ),
            scratch_shapes=[
                pltpu.VMEM((tm, 1), jnp.float32),    # running max
                pltpu.VMEM((tm, 1), jnp.float32),    # running sum
                pltpu.VMEM((tm, 1), jnp.float32),    # target logit
            ],
        ),
        compiler_params=pltpu.CompilerParams(
            dimension_semantics=("parallel", "arbitrary")
        ),
    )(tp, wt, bp, labp)

    if Mp != M or Vp != valid_v:
        logits = logits[:M, :valid_v]
    if Mp != M:
        loss = loss[:M]
        cnt = cnt[:M]
    return logits, loss, cnt


# ---------------------------------------------------------------------------
# Model: parameters + forward (BertForMaskedLM semantics)
# ---------------------------------------------------------------------------
def init_params(key, cfg):
    std = cfg["initializer_range"]
    H, I, V = cfg["hidden_size"], cfg["intermediate_size"], cfg["vocab_size"]
    n_layers = cfg["num_hidden_layers"]
    keys = iter(jax.random.split(key, 8 + 8 * n_layers))

    def nrm(shape):
        return (std * jax.random.normal(next(keys), shape)).astype(jnp.bfloat16)

    Hp = _round_up(H, 128)
    Vp = _round_up(V, 128)

    we = nrm((V, H))
    params = {
        "word_embeddings": we,                              # [V, H] for the lookup
        # tied decoder weight: pre-transposed + pre-padded ONCE at init -> standard [K, N]
        # operand for the MLM-head matmul, zero per-call pad/transpose copies
        "decoder_wt": _pad2d(we.T, Hp, Vp),
        "position_embeddings": nrm((cfg["max_position_embeddings"], H)),
        "token_type_embeddings": nrm((cfg["type_vocab_size"], H)),
        "emb_ln_g": jnp.ones((H,), jnp.float32),
        "emb_ln_b": jnp.zeros((H,), jnp.float32),
        "layers": [],
        "mlm_dense_w": nrm((H, H)),
        "mlm_dense_b": jnp.zeros((H,), jnp.float32),
        "mlm_ln_g": jnp.ones((H,), jnp.float32),
        "mlm_ln_b": jnp.zeros((H,), jnp.float32),
        "mlm_bias": jnp.zeros((Vp,), jnp.float32),           # padded cols masked in-kernel
    }
    for _ in range(n_layers):
        params["layers"].append({
            # fused Q/K/V projection weight [H, 3H]
            "w_qkv": jnp.concatenate([nrm((H, H)), nrm((H, H)), nrm((H, H))], axis=1),
            "b_qkv": jnp.zeros((3 * H,), jnp.float32),
            "wo": nrm((H, H)), "bo": jnp.zeros((H,), jnp.float32),
            "ln1_g": jnp.ones((H,), jnp.float32), "ln1_b": jnp.zeros((H,), jnp.float32),
            "wi": nrm((H, I)), "bi": jnp.zeros((I,), jnp.float32),
            "wo2": nrm((I, H)), "bo2": jnp.zeros((H,), jnp.float32),
            "ln2_g": jnp.ones((H,), jnp.float32), "ln2_b": jnp.zeros((H,), jnp.float32),
        })
    return params


def bert_mlm_forward(params, input_ids, labels, cfg):
    B, S = input_ids.shape
    H = cfg["hidden_size"]
    V = cfg["vocab_size"]
    nh = cfg["num_attention_heads"]
    dh = H // nh
    M = B * S

    # --- embeddings: gather word rows, fuse (pos + token_type) adds into the LN kernel ---
    we = params["word_embeddings"]
    x = jnp.take(we, input_ids, axis=0)                           # [B, S, H] bf16
    pos_type = (params["position_embeddings"][:S].astype(jnp.float32)
                + params["token_type_embeddings"][0].astype(jnp.float32)
                ).astype(jnp.bfloat16)                            # [S, H] (tiny, XLA)
    x = embedding_layernorm(x, pos_type, params["emb_ln_g"], params["emb_ln_b"])
    x = x.reshape(M, H)

    # --- transformer encoder layers ---
    for lyr in params["layers"]:
        qkv = matmul_bias_act(x, lyr["w_qkv"], lyr["b_qkv"])       # [M, 3H] (fused QKV)
        ctx = attention(qkv.reshape(B, S, 3 * H), nh, dh)          # [B, S, H]
        attn_out = matmul_bias_act(ctx.reshape(M, H), lyr["wo"], lyr["bo"])
        x = layernorm(attn_out, lyr["ln1_g"], lyr["ln1_b"], residual=x)

        h = matmul_bias_act(x, lyr["wi"], lyr["bi"], act="gelu")
        ffn = matmul_bias_act(h, lyr["wo2"], lyr["bo2"])
        x = layernorm(ffn, lyr["ln2_g"], lyr["ln2_b"], residual=x)

    # --- MLM head: transform (dense+gelu+LN) then tied decoder fused with CE ---
    t = matmul_bias_act(x, params["mlm_dense_w"], params["mlm_dense_b"], act="gelu")
    t = layernorm(t, params["mlm_ln_g"], params["mlm_ln_b"])
    logits, per_tok_loss, valid = decoder_cross_entropy(
        t, params["decoder_wt"], params["mlm_bias"], labels.reshape(M), V)

    loss = jnp.sum(per_tok_loss) / jnp.maximum(jnp.sum(valid), 1.0)
    return loss, logits.reshape(B, S, -1)


# ---------------------------------------------------------------------------
if __name__ == "__main__":
    # Small, TPU-friendly config mirroring TRAIN_MLM_CONFIG's structure.
    cfg = {
        "vocab_size": 256,
        "hidden_size": 128,
        "num_hidden_layers": 2,
        "num_attention_heads": 2,
        "intermediate_size": 512,
        "max_position_embeddings": 32,
        "type_vocab_size": 1,
        "initializer_range": 0.02,
    }
    B, S = 2, 16

    root = jax.random.PRNGKey(0)
    k_params, k_ids, k_mask = jax.random.split(root, 3)
    params = init_params(k_params, cfg)

    input_ids = jax.random.randint(k_ids, (B, S), 0, cfg["vocab_size"], dtype=jnp.int32)
    mask = jax.random.uniform(k_mask, (B, S)) < 0.15
    labels = jnp.where(mask, input_ids, jnp.full_like(input_ids, -100))
    labels = labels.at[0, 0].set(input_ids[0, 0])   # ensure at least one MLM target

    loss, logits = bert_mlm_forward(params, input_ids, labels, cfg)
    jax.block_until_ready(loss)
    jax.block_until_ready(logits)
    assert logits.shape == (B, S, cfg["vocab_size"])
    assert jnp.isfinite(loss.astype(jnp.float32))
    print("KERNEL_OK")
</pallas_src>

<mosaic_0001>
module attributes {stable_mosaic.version = 11 : i64} {
  func.func @_emb_add_ln_kernel(%arg0: i32, %arg1: memref<1x16x128xbf16, #tpu.memory_space<vmem>>, %arg2: memref<16x128xbf16, #tpu.memory_space<vmem>>, %arg3: memref<1x128xf32, #tpu.memory_space<vmem>>, %arg4: memref<1x128xf32, #tpu.memory_space<vmem>>, %arg5: memref<1x16x128xbf16, #tpu.memory_space<vmem>>) attributes {dimension_semantics = [#tpu.dimension_semantics<parallel>], iteration_bounds = array<i64: 2>, scalar_prefetch = 0 : i64, scratch_operands = 0 : i64, tpu.core_type = #tpu.core_type<tc>, window_params = [{transform_indices = @transform_0, window_bounds = array<i64: 1, 16, 128>}, {pipeline_mode = #tpu.pipeline_mode<synchronous>, transform_indices = @transform_1, window_bounds = array<i64: 16, 128>}, {pipeline_mode = #tpu.pipeline_mode<synchronous>, transform_indices = @transform_2, window_bounds = array<i64: 1, 128>}, {pipeline_mode = #tpu.pipeline_mode<synchronous>, transform_indices = @transform_3, window_bounds = array<i64: 1, 128>}, {transform_indices = @transform_4, window_bounds = array<i64: 1, 16, 128>}]} {
    %c0 = arith.constant 0 : index
    %c0_0 = arith.constant 0 : index
    %c0_1 = arith.constant 0 : index
    %0 = vector.load %arg1[%c0, %c0_0, %c0_1] : memref<1x16x128xbf16, #tpu.memory_space<vmem>>, vector<1x16x128xbf16>
    %1 = vector.shape_cast %0 : vector<1x16x128xbf16> to vector<16x128xbf16>
    %2 = arith.extf %1 : vector<16x128xbf16> to vector<16x128xf32>
    %c0_2 = arith.constant 0 : index
    %c0_3 = arith.constant 0 : index
    %3 = vector.load %arg2[%c0_2, %c0_3] : memref<16x128xbf16, #tpu.memory_space<vmem>>, vector<16x128xbf16>
    %4 = arith.extf %3 : vector<16x128xbf16> to vector<16x128xf32>
    %5 = arith.addf %2, %4 : vector<16x128xf32>
    %cst = arith.constant dense<0.000000e+00> : vector<16xf32>
    %6 = vector.multi_reduction <add>, %5, %cst [1] : vector<16x128xf32> to vector<16xf32>
    %7 = vector.shape_cast %6 : vector<16xf32> to vector<16x1xf32>
    %cst_4 = arith.constant 1.280000e+02 : f32
    %8 = vector.broadcast %cst_4 : f32 to vector<16x1xf32>
    %9 = arith.divf %7, %8 : vector<16x1xf32>
    %10 = vector.broadcast %9 : vector<16x1xf32> to vector<16x128xf32>
    %11 = arith.subf %5, %10 : vector<16x128xf32>
    %12 = arith.mulf %11, %11 : vector<16x128xf32>
    %cst_5 = arith.constant dense<0.000000e+00> : vector<16xf32>
    %13 = vector.multi_reduction <add>, %12, %cst_5 [1] : vector<16x128xf32> to vector<16xf32>
    %14 = vector.shape_cast %13 : vector<16xf32> to vector<16x1xf32>
    %cst_6 = arith.constant 1.280000e+02 : f32
    %15 = vector.broadcast %cst_6 : f32 to vector<16x1xf32>
    %16 = arith.divf %14, %15 : vector<16x1xf32>
    %17 = vector.broadcast %9 : vector<16x1xf32> to vector<16x128xf32>
    %18 = arith.subf %5, %17 : vector<16x128xf32>
    %cst_7 = arith.constant 9.99999996E-13 : f32
    %19 = vector.broadcast %cst_7 : f32 to vector<16x1xf32>
    %20 = arith.addf %16, %19 : vector<16x1xf32>
    %21 = math.rsqrt %20 : vector<16x1xf32>
    %22 = vector.broadcast %21 : vector<16x1xf32> to vector<16x128xf32>
    %23 = arith.mulf %18, %22 : vector<16x128xf32>
    %c0_8 = arith.constant 0 : index
    %c0_9 = arith.constant 0 : index
    %24 = vector.load %arg3[%c0_8, %c0_9] : memref<1x128xf32, #tpu.memory_space<vmem>>, vector<1x128xf32>
    %25 = vector.broadcast %24 : vector<1x128xf32> to vector<16x128xf32>
    %26 = arith.mulf %23, %25 : vector<16x128xf32>
    %c0_10 = arith.constant 0 : index
    %c0_11 = arith.constant 0 : index
    %27 = vector.load %arg4[%c0_10, %c0_11] : memref<1x128xf32, #tpu.memory_space<vmem>>, vector<1x128xf32>
    %28 = vector.broadcast %27 : vector<1x128xf32> to vector<16x128xf32>
    %29 = arith.addf %26, %28 : vector<16x128xf32>
    %30 = arith.truncf %29 : vector<16x128xf32> to vector<16x128xbf16>
    %c0_12 = arith.constant 0 : index
    %c0_13 = arith.constant 0 : index
    %c0_14 = arith.constant 0 : index
    %31 = vector.load %arg5[%c0_12, %c0_13, %c0_14] : memref<1x16x128xbf16, #tpu.memory_space<vmem>>, vector<1x16x128xbf16>
    %32 = vector.shape_cast %31 : vector<1x16x128xbf16> to vector<16x128xbf16>
    %33 = vector.shape_cast %30 : vector<16x128xbf16> to vector<1x16x128xbf16>
    tpu.vector_store %arg5[%c0_12, %c0_13, %c0_14], %33 {strides = array<i32>} : memref<1x16x128xbf16, #tpu.memory_space<vmem>>, vector<1x16x128xbf16>,
    return
  }
  func.func @transform_0(%arg0: i32) -> (i32, i32, i32) {
    %c0_i32 = arith.constant 0 : i32
    %c0_i32_0 = arith.constant 0 : i32
    %c0_i32_1 = arith.constant 0 : i32
    return %arg0, %c0_i32, %c0_i32_0 : i32, i32, i32
  }
  func.func @transform_1(%arg0: i32) -> (i32, i32) {
    %c0_i32 = arith.constant 0 : i32
    %c0_i32_0 = arith.constant 0 : i32
    %c0_i32_1 = arith.constant 0 : i32
    return %c0_i32, %c0_i32_0 : i32, i32
  }
  func.func @transform_2(%arg0: i32) -> (i32, i32) {
    %c0_i32 = arith.constant 0 : i32
    %c0_i32_0 = arith.constant 0 : i32
    %c0_i32_1 = arith.constant 0 : i32
    return %c0_i32, %c0_i32_0 : i32, i32
  }
  func.func @transform_3(%arg0: i32) -> (i32, i32) {
    %c0_i32 = arith.constant 0 : i32
    %c0_i32_0 = arith.constant 0 : i32
    %c0_i32_1 = arith.constant 0 : i32
    return %c0_i32, %c0_i32_0 : i32, i32
  }
  func.func @transform_4(%arg0: i32) -> (i32, i32, i32) {
    %c0_i32 = arith.constant 0 : i32
    %c0_i32_0 = arith.constant 0 : i32
    %c0_i32_1 = arith.constant 0 : i32
    return %arg0, %c0_i32, %c0_i32_0 : i32, i32, i32
  }
}

</mosaic_0001>

<llo_original>
// kernel: tpu_custom_call.1
$region0: #{tpu_custom_call.1}
  #allocation0 [shape = 'u32[]', space=smem, size = 0x4, offset = 0x4, fixed_abs, tag = 'smem constant byte address 0x4 - core index']
  #allocation1 [shape = 'u32[72,128]{1,0:T(1,128)}', space=vmem, size = 0x9000, scoped, tag = 'internal scratch']
  %s0 = inlined_call_operand.hbm [shape: bf16[2,16,128], index: 0, kind: input, shape index: {}]
  %s1 = inlined_call_operand.hbm [shape: bf16[16,128], index: 1, kind: input, shape index: {}]
  %s2 = inlined_call_operand.vmem [shape: f32[1,128], index: 2, kind: input, shape index: {}]
  %s3 = inlined_call_operand.vmem [shape: f32[1,128], index: 3, kind: input, shape index: {}]
  %s4 = inlined_call_operand.hbm [shape: bf16[2,16,128], index: 4, kind: output, shape index: {}]
  %s5 = sld [smem:[#allocation0]]
  $region57: #{tpu_custom_call.1} parent=0
    _
  %s7 = ssub.s32 1, %s5
  %s8 = scalar_select 0, %s7, %s5
  $region1: #{tpu_custom_call.1} parent=0
    #allocation2 [shape = 'u8[8192]{0}', space=vmem, size = 0x2000, scoped, tag = 'input window, operand 0']
    #allocation3 [shape = 's32[2]{0}', space=sflag, size = 0x8, scoped, tag = 'scoped memory for tpu_custom_call.1']
    #allocation4 [shape = 's32[2]{0}', space=sflag, size = 0x8, scoped, tag = 'scoped memory for tpu_custom_call.1']
    #allocation5 [shape = 'u8[4096]{0}', space=vmem, size = 0x1000, scoped, tag = 'input window, operand 1, single buffered']
    #allocation6 [shape = 's32[1]{0}', space=sflag, size = 0x4, scoped, tag = 'scoped memory for tpu_custom_call.1']
    #allocation7 [shape = 'u8[8192]{0}', space=vmem, size = 0x2000, scoped, tag = 'output window, operand 0']
    %9 = vsyncpa [#allocation3], 0
    %s10 = scalar_lea.sflag [#allocation3], 1
    %11 = vsyncpa %s10, 0
    %12 = vsyncpa [#allocation6], 0
    %13 = vsyncpa [#allocation4], 0
    %s14 = scalar_lea.sflag [#allocation4], 1
    %15 = vsyncpa %s14, 0
    loop: start=0, step=1, limit=4
    $region2: #{tpu_custom_call.1} parent=1 // loop_pre_header
      _
    $region3: #{tpu_custom_call.1} parent=1 // loop_header
      %s17 = sphi 0, %s21
      %p18 = scmp.ge.s32.totalorder %s17, 4
      %s27 = sphi 0, %s29
      %s30 = sphi 0, %s27
      %s31 = sphi 0, %s30
      %s47 = sphi 0, %s31
      %s51 = sphi 0, %s51
      %s53 = sphi 0, %s51
      %s54 = sphi 0, %s53
      %s68 = sphi 0, %s54
      %s72 = sphi 0, %s72
      %s74 = sphi 0, %s72
      %s75 = sphi 0, %s74
      %s89 = sphi 0, %s75
      %s93 = sphi 0, %s93
      %s95 = sphi 0, %s93
      %s96 = sphi 0, %s95
      %s110 = sphi 0, %s96
      %s116 = sphi 0, %s118
      %s119 = sphi 0, %s116
      %s120 = sphi 0, %s119
      %s136 = sphi 0, %s120
    $region4: #{tpu_custom_call.1} parent=1 // loop_header_branch
      %20 = sbr.rel (%p18) target = $region8
    $region5: #{tpu_custom_call.1} parent=1 // loop_body
      %s22 = ssub.s32 %s17, 1
      %s23 = ssub.s32 %s17, 2
      %s24 = sadd.s32 %s17, 1
      %s25 = ssub.s32 %s17, %s24
      %p26 = scmp.eq.s32.totalorder %s25, 0
      %s28 = sadd.s32 %s27, 1
      %s29 = scalar_select %p26, %s27, %s28
      %p32 = pneg %p26
      %p33 = scmp.eq.s32.totalorder %s17, 1
      %p34 = por %p32, %p33
      %p35 = scmp.ne.s32.totalorder %s27, %s30
      %p36 = scmp.eq.s32.totalorder %s17, 0
      %p37 = por %p35, %p36
      %p38 = scmp.ne.s32.totalorder %s27, %s30
      %p39 = scmp.eq.s32.totalorder %s22, 1
      %p40 = por %p38, %p39
      %p41 = scmp.ne.s32.totalorder %s30, %s31
      %p42 = scmp.eq.s32.totalorder %s22, 0
      %p43 = por %p41, %p42
      %p44 = scmp.ne.s32.totalorder %s30, %s31
      %p45 = scmp.eq.s32.totalorder %s23, 1
      %p46 = por %p44, %p45
      %p48 = scmp.ne.s32.totalorder %s31, %s47
      %p49 = scmp.eq.s32.totalorder %s23, 0
      %p50 = por %p48, %p49
      %s52 = sadd.s32 %s51, 1
      %p55 = scmp.eq.s32.totalorder %s17, 1
      %p56 = scmp.ne.s32.totalorder %s51, %s53
      %p57 = scmp.eq.s32.totalorder %s17, 0
      %p58 = por %p56, %p57
      %p59 = scmp.ne.s32.totalorder %s51, %s53
      %p60 = scmp.eq.s32.totalorder %s22, 1
      %p61 = por %p59, %p60
      %p62 = scmp.ne.s32.totalorder %s53, %s54
      %p63 = scmp.eq.s32.totalorder %s22, 0
      %p64 = por %p62, %p63
      %p65 = scmp.ne.s32.totalorder %s53, %s54
      %p66 = scmp.eq.s32.totalorder %s23, 1
      %p67 = por %p65, %p66
      %p69 = scmp.ne.s32.totalorder %s54, %s68
      %p70 = scmp.eq.s32.totalorder %s23, 0
      %p71 = por %p69, %p70
      %s73 = sadd.s32 %s72, 1
      %p76 = scmp.eq.s32.totalorder %s17, 1
      %p77 = scmp.ne.s32.totalorder %s72, %s74
      %p78 = scmp.eq.s32.totalorder %s17, 0
      %p79 = por %p77, %p78
      %p80 = scmp.ne.s32.totalorder %s72, %s74
      %p81 = scmp.eq.s32.totalorder %s22, 1
      %p82 = por %p80, %p81
      %p83 = scmp.ne.s32.totalorder %s74, %s75
      %p84 = scmp.eq.s32.totalorder %s22, 0
      %p85 = por %p83, %p84
      %p86 = scmp.ne.s32.totalorder %s74, %s75
      %p87 = scmp.eq.s32.totalorder %s23, 1
      %p88 = por %p86, %p87
      %p90 = scmp.ne.s32.totalorder %s75, %s89
      %p91 = scmp.eq.s32.totalorder %s23, 0
      %p92 = por %p90, %p91
      %s94 = sadd.s32 %s93, 1
      %p97 = scmp.eq.s32.totalorder %s17, 1
      %p98 = scmp.ne.s32.totalorder %s93, %s95
      %p99 = scmp.eq.s32.totalorder %s17, 0
      %p100 = por %p98, %p99
      %p101 = scmp.ne.s32.totalorder %s93, %s95
      %p102 = scmp.eq.s32.totalorder %s22, 1
      %p103 = por %p101, %p102
      %p104 = scmp.ne.s32.totalorder %s95, %s96
      %p105 = scmp.eq.s32.totalorder %s22, 0
      %p106 = por %p104, %p105
      %p107 = scmp.ne.s32.totalorder %s95, %s96
      %p108 = scmp.eq.s32.totalorder %s23, 1
      %p109 = por %p107, %p108
      %p111 = scmp.ne.s32.totalorder %s96, %s110
      %p112 = scmp.eq.s32.totalorder %s23, 0
      %p113 = por %p111, %p112
      %s114 = ssub.s32 %s17, %s24
      %p115 = scmp.eq.s32.totalorder %s114, 0
      %s117 = sadd.s32 %s116, 1
      %s118 = scalar_select %p115, %s116, %s117
      %p121 = pneg %p115
      %p122 = scmp.eq.s32.totalorder %s17, 1
      %p123 = por %p121, %p122
      %p124 = scmp.ne.s32.totalorder %s116, %s119
      %p125 = scmp.eq.s32.totalorder %s17, 0
      %p126 = por %p124, %p125
      %p127 = scmp.ne.s32.totalorder %s116, %s119
      %p128 = scmp.eq.s32.totalorder %s22, 1
      %p129 = por %p127, %p128
      %p130 = scmp.ne.s32.totalorder %s119, %s120
      %p131 = scmp.eq.s32.totalorder %s22, 0
      %p132 = por %p130, %p131
      %p133 = scmp.ne.s32.totalorder %s119, %s120
      %p134 = scmp.eq.s32.totalorder %s23, 1
      %p135 = por %p133, %p134
      %p137 = scmp.ne.s32.totalorder %s120, %s136
      %p138 = scmp.eq.s32.totalorder %s23, 0
      %p139 = por %p137, %p138
      %p140 = scmp.le.s32.totalorder 1, %s17
      %p141 = scmp.lt.s32.totalorder %s17, 3
      %p142 = pnand %p140, %p141
      %p143 = pneg %p142
      // Predicated region
      $region9: #{tpu_custom_call.1} parent=5 // pred_check
        _
      $region10: #{tpu_custom_call.1} parent=5 // pred_check_branch
        %145 = sbr.rel (%p142) target = $region12
      $region11: #{tpu_custom_call.1} parent=5 // pred_region
        %s146 = ssub.s32 %s17, 1
        // Predicated region
        $region13: #{tpu_custom_call.1} parent=11 // pred_check
          %p147 = pneg %p64
        $region14: #{tpu_custom_call.1} parent=11 // pred_check_branch
          %149 = sbr.rel (%p147) target = $region16
        $region15: #{tpu_custom_call.1} parent=11 // pred_region
          %151 = vsyncadd [#allocation6], 0
          %s152 = sshll.u32 %s1, 4
          %s153 = int_to_ptr.hbm [resolvable:$true] %s152
          %s154 = sshll.u32 [#allocation5], 4
          %s155 = int_to_ptr.vmem [resolvable:$true] %s154
          %160 = dma.hbm_to_vmem [thread:$0]  %s153, 128, %s155, [#allocation6], 64, 64, 4
        $region16: #{tpu_custom_call.1} parent=11 // pred_fallthru
          _
        // Predicated region
        $region17: #{tpu_custom_call.1} parent=11 // pred_check
          %p161 = pneg %p85
        $region18: #{tpu_custom_call.1} parent=11 // pred_check_branch
          %163 = sbr.rel (%p161) target = $region20
        $region19: #{tpu_custom_call.1} parent=11 // pred_region
          _
        $region20: #{tpu_custom_call.1} parent=11 // pred_fallthru
          _
        // Predicated region
        $region21: #{tpu_custom_call.1} parent=11 // pred_check
          %p164 = pneg %p106
        $region22: #{tpu_custom_call.1} parent=11 // pred_check_branch
          %166 = sbr.rel (%p164) target = $region24
        $region23: #{tpu_custom_call.1} parent=11 // pred_region
          _
        $region24: #{tpu_custom_call.1} parent=11 // pred_fallthru
          _
      $region12: #{tpu_custom_call.1} parent=5 // pred_fallthru
        _
      %p167 = scmp.lt.s32.totalorder %s17, 2
      // Predicated region
      $region25: #{tpu_custom_call.1} parent=5 // pred_check
        %p168 = pneg %p167
      $region26: #{tpu_custom_call.1} parent=5 // pred_check_branch
        %170 = sbr.rel (%p168) target = $region28
      $region27: #{tpu_custom_call.1} parent=5 // pred_region
        // Predicated region
        $region29: #{tpu_custom_call.1} parent=27 // pred_check
          %p171 = pneg %p37
        $region30: #{tpu_custom_call.1} parent=27 // pred_check_branch
          %173 = sbr.rel (%p171) target = $region32
        $region31: #{tpu_custom_call.1} parent=27 // pred_region
          %s174 = sand.u32 %s27, 1
          %s175 = scalar_lea.sflag [#allocation3], %s174
          %s176 = sand.u32 %s27, 1
          %s177 = smul.addr %s176, 8
          %s178 = scalar_lea.vmem [#allocation2], %s177
          %180 = vsyncadd %s175, 0
          %s181 = smul.addr %s17, 2
          %s182 = smul.addr %s181, 4
          %s183 = scalar_lea.hbm %s0, %s182
          %s184 = sshll.u32 %s183, 4
          %s185 = int_to_ptr.hbm [resolvable:$true] %s184
          %s186 = sshll.u32 %s178, 4
          %s187 = int_to_ptr.vmem [resolvable:$true] %s186
          %192 = dma.hbm_to_vmem [thread:$0]  %s185, 128, %s187, %s175, 64, 64, 4
        $region32: #{tpu_custom_call.1} parent=27 // pred_fallthru
          _
      $region28: #{tpu_custom_call.1} parent=5 // pred_fallthru
        _
      %p193 = scmp.le.s32.totalorder 1, %s17
      %p194 = scmp.lt.s32.totalorder %s17, 3
      %p195 = pnand %p193, %p194
      %p196 = pneg %p195
      // Predicated region
      $region33: #{tpu_custom_call.1} parent=5 // pred_check
        _
      $region34: #{tpu_custom_call.1} parent=5 // pred_check_branch
        %198 = sbr.rel (%p195) target = $region36
      $region35: #{tpu_custom_call.1} parent=5 // pred_region
        %s199 = ssub.s32 %s17, 1
        %s200 = sand.u32 %s30, 1
        %s201 = scalar_lea.sflag [#allocation3], %s200
        %s202 = sand.u32 %s30, 1
        %s203 = smul.addr %s202, 8
        %s204 = scalar_lea.vmem [#allocation2], %s203
        // Predicated region
        $region37: #{tpu_custom_call.1} parent=35 // pred_check
          %p205 = pneg %p43
        $region38: #{tpu_custom_call.1} parent=35 // pred_check_branch
          %207 = sbr.rel (%p205) target = $region40
        $region39: #{tpu_custom_call.1} parent=35 // pred_region
          %209 = dma.done %s201, 128
        $region40: #{tpu_custom_call.1} parent=35 // pred_fallthru
          _
        // Predicated region
        $region41: #{tpu_custom_call.1} parent=35 // pred_check
          %p210 = pneg %p64
        $region42: #{tpu_custom_call.1} parent=35 // pred_check_branch
          %212 = sbr.rel (%p210) target = $region44
        $region43: #{tpu_custom_call.1} parent=35 // pred_region
          %214 = dma.done [#allocation6], 128
        $region44: #{tpu_custom_call.1} parent=35 // pred_fallthru
          _
        %s215 = sand.u32 %s30, 1
        %s216 = scalar_lea.sflag [#allocation3], %s215
        %s217 = sand.u32 %s30, 1
        %s218 = smul.addr %s217, 8
        %s219 = scalar_lea.vmem [#allocation2], %s218
        %p220 = pneg %p43
        %p221 = pneg %p40
        %p222 = pneg %p64
        %p223 = pneg %p61
        %p224 = pneg %p85
        %p225 = pneg %p82
        %p226 = pneg %p106
        %p227 = pneg %p103
        %p228 = pneg %p132
        %p229 = pneg %p129
        %s230 = sand.u32 %s119, 1
        %s231 = scalar_lea.sflag [#allocation4], %s230
        %s232 = sand.u32 %s119, 1
        %s233 = smul.addr %s232, 8
        %s234 = scalar_lea.vmem [#allocation7], %s233
        %v235 = vld [vmem:[%s204] sm:$0xf]
        %v236 = vld [vmem:[%s204 + $0x4] sm:$0xf]
        %v237 = vunpack.c.l.bf16 %v235
        %v238 = vunpack.c.l.bf16 %v236
        %v239 = vld [vmem:[#allocation5] sm:$0xf]
        %v240 = vld [vmem:[#allocation5 + $0x4] sm:$0xf]
        %v241 = vunpack.c.l.bf16 %v239
        %v242 = vunpack.c.l.bf16 %v240
        %v243 = vadd.f32 %v237, %v241
        %v244 = vadd.f32 %v238, %v242
        %245 = vadd.xlane.f32.xlu0 %v243
        %v246 = vpop.xlane.xlu0 %245
        %247 = vadd.xlane.f32.xlu0 %v244
        %v248 = vpop.xlane.xlu0 %247
        %v249 = vrcp.pop 128.0
        %v250 = vmul.f32 128.0, %v249
        %v251 = vsub.f32 1.0, %v250
        %v252 = vmul.f32 %v249, %v251
        %v253 = vadd.f32 %v249, %v252
        %vm254 = vweird.f32 %v249
        %v255 = vsel %vm254, %v249, %v253
        %v256 = vmul.f32 %v246, %v255
        %v257 = vmul.f32 %v248, %v255
        %v258 = vsub.f32 %v243, %v256
        %v259 = vsub.f32 %v244, %v257
        %v260 = vmul.f32 %v258, %v258
        %v261 = vmul.f32 %v259, %v259
        %262 = vadd.xlane.f32.xlu0 %v260
        %v263 = vpop.xlane.xlu0 %262
        %264 = vadd.xlane.f32.xlu0 %v261
        %v265 = vpop.xlane.xlu0 %264
        %v266 = vmul.f32 %v263, %v255
        %v267 = vmul.f32 %v265, %v255
        %v268 = vadd.f32 %v266, 1e-12
        %v269 = vadd.f32 %v267, 1e-12
        %v270 = vrsqrt.pop %v268
        %v271 = vmul.f32 %v270, %v268
        %v272 = vmul.f32 %v271, %v270
        %v273 = vmul.f32 0.5, %v272
        %v274 = vsub.f32 1.5, %v273
        %v275 = vmul.f32 %v270, %v274
        %vm276 = vweird.f32 %v268
        %vm277 = vweird.f32 %v270
        %vm278 = vmor %vm276, %vm277
        %v279 = vsel %vm278, %v270, %v275
        %v280 = vrsqrt.pop %v269
        %v281 = vmul.f32 %v280, %v269
        %v282 = vmul.f32 %v281, %v280
        %v283 = vmul.f32 0.5, %v282
        %v284 = vsub.f32 1.5, %v283
        %v285 = vmul.f32 %v280, %v284
        %vm286 = vweird.f32 %v269
        %vm287 = vweird.f32 %v280
        %vm288 = vmor %vm286, %vm287
        %v289 = vsel %vm288, %v280, %v285
        %v290 = vmul.f32 %v258, %v279
        %v291 = vmul.f32 %v259, %v289
        %v292 = vld [vmem:[%s2] sm:$0x1]
        %v294 = vperm.slane %v292, 0
        %v296 = vmul.f32 %v290, %v294
        %v297 = vmul.f32 %v291, %v294
        %v298 = vld [vmem:[%s3] sm:$0x1]
        %v300 = vperm.slane %v298, 0
        %v302 = vadd.f32 %v296, %v300
        %v303 = vadd.f32 %v297, %v300
        %v304 = vpack.c.bf16 %v302, %v302
        %v305 = vpack.c.bf16 %v303, %v303
        %306 = vst [vmem:[%s234] sm:$0xf] %v304
        %307 = vst [vmem:[%s234 + $0x4] sm:$0xf] %v305
        %s308 = sand.u32 %s119, 1
        %s309 = scalar_lea.sflag [#allocation4], %s308
        %s310 = sand.u32 %s119, 1
        %s311 = smul.addr %s310, 8
        %s312 = scalar_lea.vmem [#allocation7], %s311
        // Predicated region
        $region45: #{tpu_custom_call.1} parent=35 // pred_check
          %p313 = pneg %p129
        $region46: #{tpu_custom_call.1} parent=35 // pred_check_branch
          %315 = sbr.rel (%p313) target = $region48
        $region47: #{tpu_custom_call.1} parent=35 // pred_region
          %317 = vsyncadd %s309, 0
          %s318 = smul.addr %s22, 2
          %s319 = smul.addr %s318, 4
          %s320 = scalar_lea.hbm %s4, %s319
          %s321 = sshll.u32 %s312, 4
          %s322 = int_to_ptr.vmem [resolvable:$true] %s321
          %s323 = sshll.u32 %s320, 4
          %s324 = int_to_ptr.hbm [resolvable:$true] %s323
          %329 = dma.vmem_to_hbm [thread:$0]  %s322, 128, %s324, %s309, 64, 64, 4
        $region48: #{tpu_custom_call.1} parent=35 // pred_fallthru
          _
      $region36: #{tpu_custom_call.1} parent=5 // pred_fallthru
        _
      %p330 = scmp.le.s32.totalorder 2, %s17
      // Predicated region
      $region49: #{tpu_custom_call.1} parent=5 // pred_check
        %p331 = pneg %p330
      $region50: #{tpu_custom_call.1} parent=5 // pred_check_branch
        %333 = sbr.rel (%p331) target = $region52
      $region51: #{tpu_custom_call.1} parent=5 // pred_region
        %s334 = ssub.s32 %s17, 2
        // Predicated region
        $region53: #{tpu_custom_call.1} parent=51 // pred_check
          %p335 = pneg %p135
        $region54: #{tpu_custom_call.1} parent=51 // pred_check_branch
          %337 = sbr.rel (%p335) target = $region56
        $region55: #{tpu_custom_call.1} parent=51 // pred_region
          %s338 = sand.u32 %s120, 1
          %s339 = scalar_lea.sflag [#allocation4], %s338
          %s340 = sand.u32 %s120, 1
          %s341 = smul.addr %s340, 8
          %s342 = scalar_lea.vmem [#allocation7], %s341
          %344 = dma.done %s339, 128
        $region56: #{tpu_custom_call.1} parent=51 // pred_fallthru
          _
      $region52: #{tpu_custom_call.1} parent=5 // pred_fallthru
        _
    $region6: #{tpu_custom_call.1} parent=1 // loop_footer
      %s21 = sadd.s32 1, %s17
    $region7: #{tpu_custom_call.1} parent=1 // loop_footer_branch
      %16 = sbr.rel target = $region3
    $region8: #{tpu_custom_call.1} parent=1 // loop_exit
      _
    %345 = vsyncpa [#allocation3], 1
    %s346 = scalar_lea.sflag [#allocation3], 1
    %347 = vsyncpa %s346, 1
    %348 = vsyncpa [#allocation6], 1
    %349 = vsyncpa [#allocation4], 1
    %s350 = scalar_lea.sflag [#allocation4], 1
    %351 = vsyncpa %s350, 1

</llo_original>
